<compile_context>
chip_gen: v6e
topology: v6e:2x2x1
jax: 0.10.0
libtpu: 0.0.40
codegen_flags: <defaults>
</compile_context>

<pallas_src>
import functools

import jax
import jax.numpy as jnp
from jax import lax
from jax.experimental import pallas as pl
from jax.experimental.pallas import tpu as pltpu


def _attention_head_kernel(x_ref, wqkv_ref, o_ref, *, batch, seq, head_size):
    """x_ref: (B*T, C), wqkv_ref: (C, 3*HS), o_ref: (B*T, HS)."""
    x = x_ref[...].astype(jnp.float32)                      # (B*T, C)
    C = x.shape[-1]
    # NOTE: the reference module scales by embedding_dim**-0.5 (C), not head_size.
    scale = jnp.float32(C) ** -0.5

    # Fused q|k|v projection: one MXU matmul instead of three tiny ones.
    qkv = jnp.dot(x, wqkv_ref[...].astype(jnp.float32),
                  preferred_element_type=jnp.float32)        # (B*T, 3*HS)
    q = qkv[:, 0 * head_size:1 * head_size]
    k = qkv[:, 1 * head_size:2 * head_size]
    v = qkv[:, 2 * head_size:3 * head_size]

    row = lax.broadcasted_iota(jnp.int32, (seq, seq), 0)
    col = lax.broadcasted_iota(jnp.int32, (seq, seq), 1)
    causal = row >= col                                      # lower-triangular mask
    neg_big = jnp.float32(-1e30)                             # finite mask: no exp(-inf) NaNs

    for b in range(batch):                                   # B is tiny & static: unrolled
        lo, hi = b * seq, (b + 1) * seq
        qb, kb, vb = q[lo:hi, :], k[lo:hi, :], v[lo:hi, :]
        s = jnp.dot(qb, kb.T, preferred_element_type=jnp.float32) * scale
        s = jnp.where(causal, s, neg_big)
        m = jnp.max(s, axis=-1, keepdims=True)
        e = jnp.exp(s - m)
        denom = jnp.sum(e, axis=-1, keepdims=True)
        p = e * pl.reciprocal(denom)                         # exact; dropout == identity
        o_ref[lo:hi, :] = jnp.dot(
            p, vb, preferred_element_type=jnp.float32).astype(o_ref.dtype)


def attention_head(x, wq, wk, wv):
    """x: (B, T, C); wq/wk/wv: (C, head_size). Returns (B, T, head_size)."""
    B, T, C = x.shape
    HS = wq.shape[1]
    # Fold batch into the matmul M dimension and fuse the three projections.
    x2d = x.reshape(B * T, C)
    wqkv = jnp.concatenate([wq, wk, wv], axis=1)             # (C, 3*HS)

    out2d = pl.pallas_call(
        functools.partial(_attention_head_kernel, batch=B, seq=T, head_size=HS),
        out_shape=jax.ShapeDtypeStruct((B * T, HS), x.dtype),
        grid=(1,),                                           # single step: no per-batch grid overhead
        in_specs=[
            pl.BlockSpec((B * T, C), lambda i: (0, 0)),
            pl.BlockSpec((C, 3 * HS), lambda i: (0, 0)),
        ],
        out_specs=pl.BlockSpec((B * T, HS), lambda i: (0, 0)),
        compiler_params=pltpu.CompilerParams(
            dimension_semantics=("arbitrary",),
            vmem_limit_bytes=16 << 20,
        ),
    )(x2d, wqkv)
    return out2d.reshape(B, T, HS)


# ------------------------- pure-JAX reference -------------------------
def _reference(x, wq, wk, wv):
    B, T, C = x.shape
    q = x @ wq
    k = x @ wk
    v = x @ wv
    s = (q @ jnp.swapaxes(k, -1, -2)) * (C ** -0.5)
    causal = jnp.tril(jnp.ones((T, T), bool))
    s = jnp.where(causal, s, -jnp.inf)
    w = jax.nn.softmax(s, axis=-1)
    return w @ v


if __name__ == "__main__":
    # Shapes implied by the module (small, deterministic).
    B, T, C = 2, 8, 32          # batch, seq (== block_size), embedding_dimension
    head_size = 8               # dropout = 0.0 -> identity

    key = jax.random.PRNGKey(0)
    kx, kq, kk, kv = jax.random.split(key, 4)
    s = 0.02
    wq = s * jax.random.normal(kq, (C, head_size), jnp.float32)
    wk = s * jax.random.normal(kk, (C, head_size), jnp.float32)
    wv = s * jax.random.normal(kv, (C, head_size), jnp.float32)
    x = jax.random.normal(kx, (B, T, C), jnp.float32)

    out = attention_head(x, wq, wk, wv)
    out = jax.block_until_ready(out)

    ref = _reference(x, wq, wk, wv)
    assert out.shape == (B, T, head_size)
    assert jnp.allclose(out, ref, atol=1e-4, rtol=1e-4), "mismatch vs reference"
    print("KERNEL_OK")
</pallas_src>

<mosaic_0001>
module attributes {stable_mosaic.version = 11 : i64} {
  func.func @_attention_head_kernel(%arg0: i32, %arg1: memref<16x32xf32, #tpu.memory_space<vmem>>, %arg2: memref<32x24xf32, #tpu.memory_space<vmem>>, %arg3: memref<16x8xf32, #tpu.memory_space<vmem>>) attributes {dimension_semantics = [#tpu.dimension_semantics<arbitrary>], iteration_bounds = array<i64: 1>, scalar_prefetch = 0 : i64, scratch_operands = 0 : i64, tpu.core_type = #tpu.core_type<tc>, window_params = [{pipeline_mode = #tpu.pipeline_mode<synchronous>, transform_indices = @transform_0, window_bounds = array<i64: 16, 32>}, {pipeline_mode = #tpu.pipeline_mode<synchronous>, transform_indices = @transform_1, window_bounds = array<i64: 32, 24>}, {pipeline_mode = #tpu.pipeline_mode<synchronous>, transform_indices = @transform_2, window_bounds = array<i64: 16, 8>}]} {
    %c0 = arith.constant 0 : index
    %c0_0 = arith.constant 0 : index
    %0 = vector.load %arg1[%c0, %c0_0] : memref<16x32xf32, #tpu.memory_space<vmem>>, vector<16x32xf32>
    %cst = arith.constant 3.200000e+01 : f32
    %cst_1 = arith.constant -5.000000e-01 : f32
    %1 = math.powf %cst, %cst_1 : f32
    %c0_2 = arith.constant 0 : index
    %c0_3 = arith.constant 0 : index
    %2 = vector.load %arg2[%c0_2, %c0_3] : memref<32x24xf32, #tpu.memory_space<vmem>>, vector<32x24xf32>
    %cst_4 = arith.constant dense<0.000000e+00> : vector<16x24xf32>
    %3 = tpu.matmul %0, %2, %cst_4 {dimension_numbers = #tpu.dot_dimension_numbers<[1], [0], [0], [1], [0, 0, 1, 1], [], []>} : vector<16x32xf32>, vector<32x24xf32>, vector<16x24xf32> -> vector<16x24xf32>
    %4 = vector.extract_strided_slice %3 {offsets = [0, 0], sizes = [16, 8], strides = [1, 1]} : vector<16x24xf32> to vector<16x8xf32>
    %5 = vector.extract_strided_slice %3 {offsets = [0, 8], sizes = [16, 8], strides = [1, 1]} : vector<16x24xf32> to vector<16x8xf32>
    %6 = vector.extract_strided_slice %3 {offsets = [0, 16], sizes = [16, 8], strides = [1, 1]} : vector<16x24xf32> to vector<16x8xf32>
    %7 = tpu.iota {dimensions = array<i32: 0>} : vector<8x8xi32>
    %8 = tpu.iota {dimensions = array<i32: 1>} : vector<8x8xi32>
    %9 = arith.cmpi sge, %7, %8 : vector<8x8xi32>
    %10 = vector.extract_strided_slice %4 {offsets = [0, 0], sizes = [8, 8], strides = [1, 1]} : vector<16x8xf32> to vector<8x8xf32>
    %11 = vector.extract_strided_slice %5 {offsets = [0, 0], sizes = [8, 8], strides = [1, 1]} : vector<16x8xf32> to vector<8x8xf32>
    %12 = vector.extract_strided_slice %6 {offsets = [0, 0], sizes = [8, 8], strides = [1, 1]} : vector<16x8xf32> to vector<8x8xf32>
    %13 = tpu.transpose %11, [1, 0] : vector<8x8xf32> -> vector<8x8xf32>
    %cst_5 = arith.constant dense<0.000000e+00> : vector<8x8xf32>
    %14 = tpu.matmul %10, %13, %cst_5 {dimension_numbers = #tpu.dot_dimension_numbers<[1], [0], [0], [1], [0, 0, 1, 1], [], []>} : vector<8x8xf32>, vector<8x8xf32>, vector<8x8xf32> -> vector<8x8xf32>
    %15 = vector.broadcast %1 : f32 to vector<8x8xf32>
    %16 = arith.mulf %14, %15 : vector<8x8xf32>
    %cst_6 = arith.constant -1.000000e+30 : f32
    %17 = vector.broadcast %cst_6 : f32 to vector<8x8xf32>
    %18 = arith.select %9, %16, %17 : vector<8x8xi1>, vector<8x8xf32>
    %cst_7 = arith.constant dense<0xFF800000> : vector<8xf32>
    %19 = vector.multi_reduction <maximumf>, %18, %cst_7 [1] : vector<8x8xf32> to vector<8xf32>
    %20 = vector.shape_cast %19 : vector<8xf32> to vector<8x1xf32>
    %21 = vector.broadcast %20 : vector<8x1xf32> to vector<8x8xf32>
    %22 = arith.subf %18, %21 : vector<8x8xf32>
    %23 = math.exp %22 : vector<8x8xf32>
    %cst_8 = arith.constant dense<0.000000e+00> : vector<8xf32>
    %24 = vector.multi_reduction <add>, %23, %cst_8 [1] : vector<8x8xf32> to vector<8xf32>
    %25 = vector.shape_cast %24 : vector<8xf32> to vector<8x1xf32>
    %26 = tpu.reciprocal %25 : vector<8x1xf32> -> vector<8x1xf32>
    %27 = vector.broadcast %26 : vector<8x1xf32> to vector<8x8xf32>
    %28 = arith.mulf %23, %27 : vector<8x8xf32>
    %cst_9 = arith.constant dense<0.000000e+00> : vector<8x8xf32>
    %29 = tpu.matmul %28, %12, %cst_9 {dimension_numbers = #tpu.dot_dimension_numbers<[1], [0], [0], [1], [0, 0, 1, 1], [], []>} : vector<8x8xf32>, vector<8x8xf32>, vector<8x8xf32> -> vector<8x8xf32>
    %c0_10 = arith.constant 0 : index
    %c0_11 = arith.constant 0 : index
    %30 = vector.load %arg3[%c0_10, %c0_11] : memref<16x8xf32, #tpu.memory_space<vmem>>, vector<8x8xf32>
    tpu.vector_store %arg3[%c0_10, %c0_11], %29 {strides = array<i32>} : memref<16x8xf32, #tpu.memory_space<vmem>>, vector<8x8xf32>,
    %31 = vector.extract_strided_slice %4 {offsets = [8, 0], sizes = [8, 8], strides = [1, 1]} : vector<16x8xf32> to vector<8x8xf32>
    %32 = vector.extract_strided_slice %5 {offsets = [8, 0], sizes = [8, 8], strides = [1, 1]} : vector<16x8xf32> to vector<8x8xf32>
    %33 = vector.extract_strided_slice %6 {offsets = [8, 0], sizes = [8, 8], strides = [1, 1]} : vector<16x8xf32> to vector<8x8xf32>
    %34 = tpu.transpose %32, [1, 0] : vector<8x8xf32> -> vector<8x8xf32>
    %cst_12 = arith.constant dense<0.000000e+00> : vector<8x8xf32>
    %35 = tpu.matmul %31, %34, %cst_12 {dimension_numbers = #tpu.dot_dimension_numbers<[1], [0], [0], [1], [0, 0, 1, 1], [], []>} : vector<8x8xf32>, vector<8x8xf32>, vector<8x8xf32> -> vector<8x8xf32>
    %36 = vector.broadcast %1 : f32 to vector<8x8xf32>
    %37 = arith.mulf %35, %36 : vector<8x8xf32>
    %cst_13 = arith.constant -1.000000e+30 : f32
    %38 = vector.broadcast %cst_13 : f32 to vector<8x8xf32>
    %39 = arith.select %9, %37, %38 : vector<8x8xi1>, vector<8x8xf32>
    %cst_14 = arith.constant dense<0xFF800000> : vector<8xf32>
    %40 = vector.multi_reduction <maximumf>, %39, %cst_14 [1] : vector<8x8xf32> to vector<8xf32>
    %41 = vector.shape_cast %40 : vector<8xf32> to vector<8x1xf32>
    %42 = vector.broadcast %41 : vector<8x1xf32> to vector<8x8xf32>
    %43 = arith.subf %39, %42 : vector<8x8xf32>
    %44 = math.exp %43 : vector<8x8xf32>
    %cst_15 = arith.constant dense<0.000000e+00> : vector<8xf32>
    %45 = vector.multi_reduction <add>, %44, %cst_15 [1] : vector<8x8xf32> to vector<8xf32>
    %46 = vector.shape_cast %45 : vector<8xf32> to vector<8x1xf32>
    %47 = tpu.reciprocal %46 : vector<8x1xf32> -> vector<8x1xf32>
    %48 = vector.broadcast %47 : vector<8x1xf32> to vector<8x8xf32>
    %49 = arith.mulf %44, %48 : vector<8x8xf32>
    %cst_16 = arith.constant dense<0.000000e+00> : vector<8x8xf32>
    %50 = tpu.matmul %49, %33, %cst_16 {dimension_numbers = #tpu.dot_dimension_numbers<[1], [0], [0], [1], [0, 0, 1, 1], [], []>} : vector<8x8xf32>, vector<8x8xf32>, vector<8x8xf32> -> vector<8x8xf32>
    %c8 = arith.constant 8 : index
    %c0_17 = arith.constant 0 : index
    %51 = vector.load %arg3[%c8, %c0_17] : memref<16x8xf32, #tpu.memory_space<vmem>>, vector<8x8xf32>
    tpu.vector_store %arg3[%c8, %c0_17], %50 {strides = array<i32>} : memref<16x8xf32, #tpu.memory_space<vmem>>, vector<8x8xf32>,
    return
  }
  func.func @transform_0(%arg0: i32) -> (i32, i32) {
    %c0_i32 = arith.constant 0 : i32
    %c0_i32_0 = arith.constant 0 : i32
    %c0_i32_1 = arith.constant 0 : i32
    return %c0_i32, %c0_i32_0 : i32, i32
  }
  func.func @transform_1(%arg0: i32) -> (i32, i32) {
    %c0_i32 = arith.constant 0 : i32
    %c0_i32_0 = arith.constant 0 : i32
    %c0_i32_1 = arith.constant 0 : i32
    return %c0_i32, %c0_i32_0 : i32, i32
  }
  func.func @transform_2(%arg0: i32) -> (i32, i32) {
    %c0_i32 = arith.constant 0 : i32
    %c0_i32_0 = arith.constant 0 : i32
    %c0_i32_1 = arith.constant 0 : i32
    return %c0_i32, %c0_i32_0 : i32, i32
  }
}

</mosaic_0001>

<llo_original>
// kernel: tpu_custom_call.1
$region0: #{tpu_custom_call.1}
  #allocation0 [shape = 'u32[]', space=smem, size = 0x4, offset = 0x4, fixed_abs, tag = 'smem constant byte address 0x4 - core index']
  #allocation1 [shape = 'u32[144,128]{1,0:T(1,128)}', space=vmem, size = 0x12000, scoped, tag = 'internal scratch']
  %s0 = inlined_call_operand.vmem [shape: f32[16,32], index: 0, kind: input, shape index: {}]
  %s1 = inlined_call_operand.vmem [shape: f32[32,24], index: 1, kind: input, shape index: {}]
  %s2 = inlined_call_operand.vmem [shape: f32[16,8], index: 2, kind: output, shape index: {}]
  %s3 = sld [smem:[#allocation0]]
  $region18: #{tpu_custom_call.1} parent=0
    _
  %s5 = ssub.s32 1, %s3
  %s6 = scalar_select 0, %s5, %s3
  // Predicated region
  $region2: #{tpu_custom_call.1} parent=0 // pred_check
    _
  $region3: #{tpu_custom_call.1} parent=0 // pred_check_branch
    %8 = sbr.rel (0) target = $region5
  $region4: #{tpu_custom_call.1} parent=0 // pred_region
    _
  $region5: #{tpu_custom_call.1} parent=0 // pred_fallthru
    _
  // Predicated region
  $region6: #{tpu_custom_call.1} parent=0 // pred_check
    _
  $region7: #{tpu_custom_call.1} parent=0 // pred_check_branch
    %10 = sbr.rel (0) target = $region9
  $region8: #{tpu_custom_call.1} parent=0 // pred_region
    _
  $region9: #{tpu_custom_call.1} parent=0 // pred_fallthru
    _
  %v11 = vld [vmem:[%s0] sm:$0xff]
  %v12 = vld [vmem:[%s0 + $0x8] sm:$0xff]
  %v13 = vld [vmem:[%s1] sm:$0xff]
  %v14 = vld [vmem:[%s1 + $0x8] sm:$0xff]
  %v15 = vld [vmem:[%s1 + $0x10] sm:$0xff]
  %v16 = vld [vmem:[%s1 + $0x18] sm:$0xff]
  %vm17 = vcmask 261120
  %v19 = vsel %vm17, %v11, 0
  %v22 = vsel %vm17, %v12, 0
  %24 = vmatprep.subr.mxu0 0.0
  %25 = vmatpush1.msra.mxu0 0.0
  %26 = vmatprep.subr.mxu0 0.0
  %27 = vmatpush1.msra.mxu0 0.0
  %28 = vmatprep.subr.mxu0 0.0
  %29 = vmatpush1.msra.mxu0 0.0
  %30 = vmatprep.subr.mxu0 0.0
  %31 = vmatpush1.msra.mxu0 0.0
  %32 = vmatprep.subr.mxu0 0.0
  %33 = vmatpush1.msra.mxu0 0.0
  %34 = vmatprep.subr.mxu0 0.0
  %35 = vmatpush1.msra.mxu0 0.0
  %36 = vmatprep.subr.mxu0 0.0
  %37 = vmatpush1.msra.mxu0 0.0
  %38 = vmatprep.subr.mxu0 0.0
  %39 = vmatpush1.msra.mxu0 0.0
  %40 = vmatprep.subr.mxu0 0.0
  %41 = vmatpush1.msra.mxu0 0.0
  %42 = vmatprep.subr.mxu0 0.0
  %43 = vmatpush1.msra.mxu0 0.0
  %44 = vmatprep.subr.mxu0 0.0
  %45 = vmatpush1.msra.mxu0 0.0
  %46 = vmatprep.subr.mxu0 0.0
  %47 = vmatpush1.msra.mxu0 0.0
  %48 = vmatprep.subr.mxu0 0.0
  %49 = vmatpush1.msra.mxu0 %v16
  %50 = vmatprep.subr.mxu0 0.0
  %51 = vmatpush1.msra.mxu0 %v15
  %52 = vmatprep.subr.mxu0 0.0
  %53 = vmatpush1.msra.mxu0 %v14
  %54 = vmatprep.subr.mxu0 0.0
  %55 = vmatpush1.msra.mxu0 %v13
  %56 = vmatprep.subr.mxu0 0.0
  %57 = vmatpush2.msra.mxu0 0.0
  %58 = vmatprep.subr.mxu0 0.0
  %59 = vmatpush2.msra.mxu0 0.0
  %60 = vmatprep.subr.mxu0 0.0
  %61 = vmatpush2.msra.mxu0 0.0
  %62 = vmatprep.subr.mxu0 0.0
  %63 = vmatpush2.msra.mxu0 0.0
  %64 = vmatprep.subr.mxu0 0.0
  %65 = vmatpush2.msra.mxu0 0.0
  %66 = vmatprep.subr.mxu0 0.0
  %67 = vmatpush2.msra.mxu0 0.0
  %68 = vmatprep.subr.mxu0 0.0
  %69 = vmatpush2.msra.mxu0 0.0
  %70 = vmatprep.subr.mxu0 0.0
  %71 = vmatpush2.msra.mxu0 0.0
  %72 = vmatprep.subr.mxu0 0.0
  %73 = vmatpush2.msra.mxu0 0.0
  %74 = vmatprep.subr.mxu0 0.0
  %75 = vmatpush2.msra.mxu0 0.0
  %76 = vmatprep.subr.mxu0 0.0
  %77 = vmatpush2.msra.mxu0 0.0
  %78 = vmatprep.subr.mxu0 0.0
  %79 = vmatpush2.msra.mxu0 0.0
  %80 = vmatprep.subr.mxu0 0.0
  %81 = vmatpush2.msra.mxu0 0.0
  %82 = vmatprep.subr.mxu0 0.0
  %83 = vmatpush2.msra.mxu0 0.0
  %84 = vmatprep.subr.mxu0 0.0
  %85 = vmatpush2.msra.mxu0 0.0
  %86 = vmatprep.subr.mxu0 0.0
  %87 = vmatpush2.msra.mxu0 0.0
  %88 = vmatprep.mubr.f32.mxu0 0.0
  %89 = vmatmul.mubr.f32.gmra.mxu0 %v19
  %v90 = vpop.f32.mrf.mxu0
  %v91 = vadd.f32 0.0, %v90
  %v92 = vpop.f32.mrf.mxu0
  %93 = vmatprep.mubr.f32.mxu0 0.0
  %94 = vmatmul.mubr.f32.gmra.mxu0 %v22
  %v95 = vpop.f32.mrf.mxu0
  %v96 = vadd.f32 0.0, %v95
  %v97 = vpop.f32.mrf.mxu0
  %98 = vdwg.mxu0
  %v99 = vlaneseq
  %v100 = vshrl.u32 %v99, 7
  %v101 = vlaneseq
  %v102 = vand.u32 %v101, 127
  %vm103 = vcmp.ge.s32.totalorder %v100, %v102
  %105 = vrot.lane.b32.xlu0 %v91, 120
  %v106 = vpop.permute.xlu0 %105
  %vm107 = vcmask 64512
  %v108 = vsel %vm107, %v91, 0
  %v110 = vsel %vm107, %v106, 0
  %112 = vmatprep.subr.mxu0 0.0
  %113 = vmatpush1.xpose.msra.mxu0 0.0
  %114 = vmatprep.subr.mxu0 0.0
  %115 = vmatpush1.xpose.msra.mxu0 0.0
  %116 = vmatprep.subr.mxu0 0.0
  %117 = vmatpush1.xpose.msra.mxu0 0.0
  %118 = vmatprep.subr.mxu0 0.0
  %119 = vmatpush1.xpose.msra.mxu0 0.0
  %120 = vmatprep.subr.mxu0 0.0
  %121 = vmatpush1.xpose.msra.mxu0 0.0
  %122 = vmatprep.subr.mxu0 0.0
  %123 = vmatpush1.xpose.msra.mxu0 0.0
  %124 = vmatprep.subr.mxu0 0.0
  %125 = vmatpush1.xpose.msra.mxu0 0.0
  %126 = vmatprep.subr.mxu0 0.0
  %127 = vmatpush1.xpose.msra.mxu0 0.0
  %128 = vmatprep.subr.mxu0 0.0
  %129 = vmatpush1.xpose.msra.mxu0 0.0
  %130 = vmatprep.subr.mxu0 0.0
  %131 = vmatpush1.xpose.msra.mxu0 0.0
  %132 = vmatprep.subr.mxu0 0.0
  %133 = vmatpush1.xpose.msra.mxu0 0.0
  %134 = vmatprep.subr.mxu0 0.0
  %135 = vmatpush1.xpose.msra.mxu0 0.0
  %136 = vmatprep.subr.mxu0 0.0
  %137 = vmatpush1.xpose.msra.mxu0 0.0
  %138 = vmatprep.subr.mxu0 0.0
  %139 = vmatpush1.xpose.msra.mxu0 0.0
  %140 = vmatprep.subr.mxu0 0.0
  %141 = vmatpush1.xpose.msra.mxu0 0.0
  %142 = vmatprep.subr.mxu0 0.0
  %143 = vmatpush1.xpose.msra.mxu0 %v110
  %144 = vmatprep.subr.mxu0 0.0
  %145 = vmatpush2.xpose.msra.mxu0 0.0
  %146 = vmatprep.subr.mxu0 0.0
  %147 = vmatpush2.xpose.msra.mxu0 0.0
  %148 = vmatprep.subr.mxu0 0.0
  %149 = vmatpush2.xpose.msra.mxu0 0.0
  %150 = vmatprep.subr.mxu0 0.0
  %151 = vmatpush2.xpose.msra.mxu0 0.0
  %152 = vmatprep.subr.mxu0 0.0
  %153 = vmatpush2.xpose.msra.mxu0 0.0
  %154 = vmatprep.subr.mxu0 0.0
  %155 = vmatpush2.xpose.msra.mxu0 0.0
  %156 = vmatprep.subr.mxu0 0.0
  %157 = vmatpush2.xpose.msra.mxu0 0.0
  %158 = vmatprep.subr.mxu0 0.0
  %159 = vmatpush2.xpose.msra.mxu0 0.0
  %160 = vmatprep.subr.mxu0 0.0
  %161 = vmatpush2.xpose.msra.mxu0 0.0
  %162 = vmatprep.subr.mxu0 0.0
  %163 = vmatpush2.xpose.msra.mxu0 0.0
  %164 = vmatprep.subr.mxu0 0.0
  %165 = vmatpush2.xpose.msra.mxu0 0.0
  %166 = vmatprep.subr.mxu0 0.0
  %167 = vmatpush2.xpose.msra.mxu0 0.0
  %168 = vmatprep.subr.mxu0 0.0
  %169 = vmatpush2.xpose.msra.mxu0 0.0
  %170 = vmatprep.subr.mxu0 0.0
  %171 = vmatpush2.xpose.msra.mxu0 0.0
  %172 = vmatprep.subr.mxu0 0.0
  %173 = vmatpush2.xpose.msra.mxu0 0.0
  %174 = vmatprep.subr.mxu0 0.0
  %175 = vmatpush2.xpose.msra.mxu0 0.0
  %176 = vmatprep.mubr.f32.mxu0 0.0
  %177 = vmatmul.mubr.f32.gmra.mxu0 %v108
  %v178 = vpop.f32.mrf.mxu0
  %v179 = vadd.f32 0.0, %v178
  %v180 = vpop.f32.mrf.mxu0
  %181 = vdwg.mxu0
  %v182 = vmul.f32 %v179, 0.17677669
  %v183 = vsel %vm103, %v182, -1e+30
  %v184 = vsel %vm107, %v183, -inf
  %185 = vmax.xlane.f32.xlu0 %v184
  %v186 = vpop.xlane.xlu0 %185
  %v187 = vsub.f32 %v183, %v186
  %v188 = vmul.f32 %v187, 1.442695
  %v189 = vpow.pop %v188
  %v190 = vsel %vm107, %v189, 0.0
  %191 = vadd.xlane.f32.xlu0 %v190
  %v192 = vpop.xlane.xlu0 %191
  %v193 = vrcp.pop %v192
  %v194 = vmul.f32 %v189, %v193
  %195 = vrot.lane.b32.xlu0 %v91, 112
  %v196 = vpop.permute.xlu0 %195
  %v199 = vsel %vm107, %v194, 0
  %201 = vmatprep.subr.mxu0 0.0
  %202 = vmatpush1.msra.mxu0 0.0
  %203 = vmatprep.subr.mxu0 0.0
  %204 = vmatpush1.msra.mxu0 0.0
  %205 = vmatprep.subr.mxu0 0.0
  %206 = vmatpush1.msra.mxu0 0.0
  %207 = vmatprep.subr.mxu0 0.0
  %208 = vmatpush1.msra.mxu0 0.0
  %209 = vmatprep.subr.mxu0 0.0
  %210 = vmatpush1.msra.mxu0 0.0
  %211 = vmatprep.subr.mxu0 0.0
  %212 = vmatpush1.msra.mxu0 0.0
  %213 = vmatprep.subr.mxu0 0.0
  %214 = vmatpush1.msra.mxu0 0.0
  %215 = vmatprep.subr.mxu0 0.0
  %216 = vmatpush1.msra.mxu0 0.0
  %217 = vmatprep.subr.mxu0 0.0
  %218 = vmatpush1.msra.mxu0 0.0
  %219 = vmatprep.subr.mxu0 0.0
  %220 = vmatpush1.msra.mxu0 0.0
  %221 = vmatprep.subr.mxu0 0.0
  %222 = vmatpush1.msra.mxu0 0.0
  %223 = vmatprep.subr.mxu0 0.0
  %224 = vmatpush1.msra.mxu0 0.0
  %225 = vmatprep.subr.mxu0 0.0
  %226 = vmatpush1.msra.mxu0 0.0
  %227 = vmatprep.subr.mxu0 0.0
  %228 = vmatpush1.msra.mxu0 0.0
  %229 = vmatprep.subr.mxu0 0.0
  %230 = vmatpush1.msra.mxu0 0.0
  %231 = vmatprep.subr.mxu0 0.0
  %232 = vmatpush1.msra.mxu0 %v196
  %233 = vmatprep.subr.mxu0 0.0
  %234 = vmatpush2.msra.mxu0 0.0
  %235 = vmatprep.subr.mxu0 0.0
  %236 = vmatpush2.msra.mxu0 0.0
  %237 = vmatprep.subr.mxu0 0.0
  %238 = vmatpush2.msra.mxu0 0.0
  %239 = vmatprep.subr.mxu0 0.0
  %240 = vmatpush2.msra.mxu0 0.0
  %241 = vmatprep.subr.mxu0 0.0
  %242 = vmatpush2.msra.mxu0 0.0
  %243 = vmatprep.subr.mxu0 0.0
  %244 = vmatpush2.msra.mxu0 0.0
  %245 = vmatprep.subr.mxu0 0.0
  %246 = vmatpush2.msra.mxu0 0.0
  %247 = vmatprep.subr.mxu0 0.0
  %248 = vmatpush2.msra.mxu0 0.0
  %249 = vmatprep.subr.mxu0 0.0
  %250 = vmatpush2.msra.mxu0 0.0
  %251 = vmatprep.subr.mxu0 0.0
  %252 = vmatpush2.msra.mxu0 0.0
  %253 = vmatprep.subr.mxu0 0.0
  %254 = vmatpush2.msra.mxu0 0.0
  %255 = vmatprep.subr.mxu0 0.0
  %256 = vmatpush2.msra.mxu0 0.0
  %257 = vmatprep.subr.mxu0 0.0
  %258 = vmatpush2.msra.mxu0 0.0
  %259 = vmatprep.subr.mxu0 0.0
  %260 = vmatpush2.msra.mxu0 0.0
  %261 = vmatprep.subr.mxu0 0.0
  %262 = vmatpush2.msra.mxu0 0.0
  %263 = vmatprep.subr.mxu0 0.0
  %264 = vmatpush2.msra.mxu0 0.0
  %265 = vmatprep.mubr.f32.mxu0 0.0
  %266 = vmatmul.mubr.f32.gmra.mxu0 %v199
  %v267 = vpop.f32.mrf.mxu0
  %v268 = vadd.f32 0.0, %v267
  %v269 = vpop.f32.mrf.mxu0
  %270 = vdwg.mxu0
  %271 = vst.msk [vmem:[%s2] sm:$0xff] %vm107, %v268
  %273 = vrot.lane.b32.xlu0 %v96, 120
  %v274 = vpop.permute.xlu0 %273
  %v275 = vsel %vm107, %v96, 0
  %v277 = vsel %vm107, %v274, 0
  %279 = vmatprep.subr.mxu0 0.0
  %280 = vmatpush1.xpose.msra.mxu0 0.0
  %281 = vmatprep.subr.mxu0 0.0
  %282 = vmatpush1.xpose.msra.mxu0 0.0
  %283 = vmatprep.subr.mxu0 0.0
  %284 = vmatpush1.xpose.msra.mxu0 0.0
  %285 = vmatprep.subr.mxu0 0.0
  %286 = vmatpush1.xpose.msra.mxu0 0.0
  %287 = vmatprep.subr.mxu0 0.0
  %288 = vmatpush1.xpose.msra.mxu0 0.0
  %289 = vmatprep.subr.mxu0 0.0
  %290 = vmatpush1.xpose.msra.mxu0 0.0
  %291 = vmatprep.subr.mxu0 0.0
  %292 = vmatpush1.xpose.msra.mxu0 0.0
  %293 = vmatprep.subr.mxu0 0.0
  %294 = vmatpush1.xpose.msra.mxu0 0.0
  %295 = vmatprep.subr.mxu0 0.0
  %296 = vmatpush1.xpose.msra.mxu0 0.0
  %297 = vmatprep.subr.mxu0 0.0
  %298 = vmatpush1.xpose.msra.mxu0 0.0
  %299 = vmatprep.subr.mxu0 0.0
  %300 = vmatpush1.xpose.msra.mxu0 0.0
  %301 = vmatprep.subr.mxu0 0.0
  %302 = vmatpush1.xpose.msra.mxu0 0.0
  %303 = vmatprep.subr.mxu0 0.0
  %304 = vmatpush1.xpose.msra.mxu0 0.0
  %305 = vmatprep.subr.mxu0 0.0
  %306 = vmatpush1.xpose.msra.mxu0 0.0
  %307 = vmatprep.subr.mxu0 0.0
  %308 = vmatpush1.xpose.msra.mxu0 0.0
  %309 = vmatprep.subr.mxu0 0.0
  %310 = vmatpush1.xpose.msra.mxu0 %v277
  %311 = vmatprep.subr.mxu0 0.0
  %312 = vmatpush2.xpose.msra.mxu0 0.0
  %313 = vmatprep.subr.mxu0 0.0
  %314 = vmatpush2.xpose.msra.mxu0 0.0
  %315 = vmatprep.subr.mxu0 0.0
  %316 = vmatpush2.xpose.msra.mxu0 0.0
  %317 = vmatprep.subr.mxu0 0.0
  %318 = vmatpush2.xpose.msra.mxu0 0.0
  %319 = vmatprep.subr.mxu0 0.0
  %320 = vmatpush2.xpose.msra.mxu0 0.0
  %321 = vmatprep.subr.mxu0 0.0
  %322 = vmatpush2.xpose.msra.mxu0 0.0
  %323 = vmatprep.subr.mxu0 0.0
  %324 = vmatpush2.xpose.msra.mxu0 0.0
  %325 = vmatprep.subr.mxu0 0.0
  %326 = vmatpush2.xpose.msra.mxu0 0.0
  %327 = vmatprep.subr.mxu0 0.0
  %328 = vmatpush2.xpose.msra.mxu0 0.0
  %329 = vmatprep.subr.mxu0 0.0
  %330 = vmatpush2.xpose.msra.mxu0 0.0
  %331 = vmatprep.subr.mxu0 0.0
  %332 = vmatpush2.xpose.msra.mxu0 0.0
  %333 = vmatprep.subr.mxu0 0.0
  %334 = vmatpush2.xpose.msra.mxu0 0.0
  %335 = vmatprep.subr.mxu0 0.0
  %336 = vmatpush2.xpose.msra.mxu0 0.0
  %337 = vmatprep.subr.mxu0 0.0
  %338 = vmatpush2.xpose.msra.mxu0 0.0
  %339 = vmatprep.subr.mxu0 0.0
  %340 = vmatpush2.xpose.msra.mxu0 0.0
  %341 = vmatprep.subr.mxu0 0.0
  %342 = vmatpush2.xpose.msra.mxu0 0.0
  %343 = vmatprep.mubr.f32.mxu0 0.0
  %344 = vmatmul.mubr.f32.gmra.mxu0 %v275
  %v345 = vpop.f32.mrf.mxu0
  %v346 = vadd.f32 0.0, %v345
  %v347 = vpop.f32.mrf.mxu0
  %348 = vdwg.mxu0
  %v349 = vmul.f32 %v346, 0.17677669
  %v350 = vsel %vm103, %v349, -1e+30
  %v351 = vsel %vm107, %v350, -inf
  %352 = vmax.xlane.f32.xlu0 %v351
  %v353 = vpop.xlane.xlu0 %352
  %v354 = vsub.f32 %v350, %v353
  %v355 = vmul.f32 %v354, 1.442695
  %v356 = vpow.pop %v355
  %v357 = vsel %vm107, %v356, 0.0
  %358 = vadd.xlane.f32.xlu0 %v357
  %v359 = vpop.xlane.xlu0 %358
  %v360 = vrcp.pop %v359
  %v361 = vmul.f32 %v356, %v360
  %362 = vrot.lane.b32.xlu0 %v96, 112
  %v363 = vpop.permute.xlu0 %362
  %v366 = vsel %vm107, %v361, 0
  %368 = vmatprep.subr.mxu0 0.0
  %369 = vmatpush1.msra.mxu0 0.0
  %370 = vmatprep.subr.mxu0 0.0
  %371 = vmatpush1.msra.mxu0 0.0
  %372 = vmatprep.subr.mxu0 0.0
  %373 = vmatpush1.msra.mxu0 0.0
  %374 = vmatprep.subr.mxu0 0.0
  %375 = vmatpush1.msra.mxu0 0.0
  %376 = vmatprep.subr.mxu0 0.0
  %377 = vmatpush1.msra.mxu0 0.0
  %378 = vmatprep.subr.mxu0 0.0
  %379 = vmatpush1.msra.mxu0 0.0
  %380 = vmatprep.subr.mxu0 0.0
  %381 = vmatpush1.msra.mxu0 0.0
  %382 = vmatprep.subr.mxu0 0.0
  %383 = vmatpush1.msra.mxu0 0.0
  %384 = vmatprep.subr.mxu0 0.0
  %385 = vmatpush1.msra.mxu0 0.0
  %386 = vmatprep.subr.mxu0 0.0
  %387 = vmatpush1.msra.mxu0 0.0
  %388 = vmatprep.subr.mxu0 0.0
  %389 = vmatpush1.msra.mxu0 0.0
  %390 = vmatprep.subr.mxu0 0.0
  %391 = vmatpush1.msra.mxu0 0.0
  %392 = vmatprep.subr.mxu0 0.0
  %393 = vmatpush1.msra.mxu0 0.0
  %394 = vmatprep.subr.mxu0 0.0
  %395 = vmatpush1.msra.mxu0 0.0
  %396 = vmatprep.subr.mxu0 0.0
  %397 = vmatpush1.msra.mxu0 0.0
  %398 = vmatprep.subr.mxu0 0.0
  %399 = vmatpush1.msra.mxu0 %v363
  %400 = vmatprep.subr.mxu0 0.0
  %401 = vmatpush2.msra.mxu0 0.0
  %402 = vmatprep.subr.mxu0 0.0
  %403 = vmatpush2.msra.mxu0 0.0
  %404 = vmatprep.subr.mxu0 0.0
  %405 = vmatpush2.msra.mxu0 0.0
  %406 = vmatprep.subr.mxu0 0.0
  %407 = vmatpush2.msra.mxu0 0.0
  %408 = vmatprep.subr.mxu0 0.0
  %409 = vmatpush2.msra.mxu0 0.0
  %410 = vmatprep.subr.mxu0 0.0
  %411 = vmatpush2.msra.mxu0 0.0
  %412 = vmatprep.subr.mxu0 0.0
  %413 = vmatpush2.msra.mxu0 0.0
  %414 = vmatprep.subr.mxu0 0.0
  %415 = vmatpush2.msra.mxu0 0.0
  %416 = vmatprep.subr.mxu0 0.0
  %417 = vmatpush2.msra.mxu0 0.0
  %418 = vmatprep.subr.mxu0 0.0
  %419 = vmatpush2.msra.mxu0 0.0
  %420 = vmatprep.subr.mxu0 0.0
  %421 = vmatpush2.msra.mxu0 0.0
  %422 = vmatprep.subr.mxu0 0.0
  %423 = vmatpush2.msra.mxu0 0.0
  %424 = vmatprep.subr.mxu0 0.0
  %425 = vmatpush2.msra.mxu0 0.0
  %426 = vmatprep.subr.mxu0 0.0
  %427 = vmatpush2.msra.mxu0 0.0
  %428 = vmatprep.subr.mxu0 0.0
  %429 = vmatpush2.msra.mxu0 0.0
  %430 = vmatprep.subr.mxu0 0.0
  %431 = vmatpush2.msra.mxu0 0.0
  %432 = vmatprep.mubr.f32.mxu0 0.0
  %433 = vmatmul.mubr.f32.gmra.mxu0 %v366
  %v434 = vpop.f32.mrf.mxu0
  %v435 = vadd.f32 0.0, %v434
  %v436 = vpop.f32.mrf.mxu0
  %437 = vdwg.mxu0
  %438 = vst.msk [vmem:[%s2 + $0x8] sm:$0xff] %vm107, %v435
  // Predicated region
  $region10: #{tpu_custom_call.1} parent=0 // pred_check
    _
  $region11: #{tpu_custom_call.1} parent=0 // pred_check_branch
    %440 = sbr.rel (0) target = $region13
  $region12: #{tpu_custom_call.1} parent=0 // pred_region
    _
  $region13: #{tpu_custom_call.1} parent=0 // pred_fallthru
    _
  // Predicated region
  $region14: #{tpu_custom_call.1} parent=0 // pred_check
    _
  $region15: #{tpu_custom_call.1} parent=0 // pred_check_branch
    %442 = sbr.rel (0) target = $region17
  $region16: #{tpu_custom_call.1} parent=0 // pred_region
    _
  $region17: #{tpu_custom_call.1} parent=0 // pred_fallthru
    _

</llo_original>
